<compile_context>
chip_gen: v5e
topology: v5e:2x2
jax: 0.10.0
libtpu: 0.0.40
codegen_flags: <defaults>
</compile_context>

<pallas_src>
import functools

import jax
import jax.numpy as jnp
from jax.experimental import pallas as pl
from jax.experimental.pallas import tpu as pltpu

MOMENTUM = 0.9  # hard-coded in Base.step()

_BATCH_TILE_BYTES = 4 << 20   # per-buffer VMEM budget for a (TB, TK, D) batch slice
_K_TILE_BYTES = 2 << 20       # per-buffer VMEM budget for a (1, TK, D) state tile


def _largest_divisor_leq(n, cap, multiple_of=1):
    """Largest divisor of n that is <= cap and a multiple of `multiple_of`.

    Falls back to n (full extent — always a legal Pallas block dim) if no
    such divisor exists.
    """
    cap = max(1, min(n, cap))
    for d in range(cap, 0, -1):
        if n % d == 0 and d % multiple_of == 0:
            return d
    return n


# ----------------------------- Pallas kernel ------------------------------ #
def _ema_mu_kernel(mu_batch_ref, mu_state_ref, out_ref, acc_ref, *, scale):
    """acc += sum(batch slice); at last batch tile: out = 0.9*state + scale*acc.

    `scale` == (1 - MOMENTUM) / B folds the batch-mean divide and the
    (1 - momentum) factor into a single compile-time constant.
    Grid: (k_tiles [parallel], b_tiles [arbitrary, reduction]).
    """
    b = pl.program_id(1)

    @pl.when(b == 0)
    def _init():
        acc_ref[...] = jnp.zeros_like(acc_ref)

    blk = mu_batch_ref[...]                       # (TB, TK, D)
    if blk.dtype != jnp.float32:                  # cast only if narrower (bf16)
        blk = blk.astype(jnp.float32)
    acc_ref[...] += jnp.sum(blk, axis=0, keepdims=True)

    @pl.when(b == pl.num_programs(1) - 1)
    def _finalize():
        state = mu_state_ref[...]                 # (1, TK, D)
        if state.dtype != jnp.float32:
            state = state.astype(jnp.float32)
        blended = MOMENTUM * state + scale * acc_ref[...]
        out_ref[...] = blended.astype(out_ref.dtype)


def ema_mu_update(mu_batch, mu_state):
    """Pallas wrapper for the EMAU mu momentum update in Base.step()."""
    B, K, D = mu_batch.shape
    assert mu_state.shape == (1, K, D)
    # Lane-density guard: D should be a multiple of 128 (unmasked vst). Full-
    # extent blocks are still legal otherwise since we always take all of D.

    in_bytes = jnp.dtype(mu_batch.dtype).itemsize
    st_bytes = jnp.dtype(mu_state.dtype).itemsize

    # K tile: multiple of 8 (or full K), bounded so a (1, TK, D) tile is small.
    TK = _largest_divisor_leq(K, max(1, _K_TILE_BYTES // max(1, D * 4)),
                              multiple_of=8)
    # Batch tile: bounded so a (TB, TK, D) slice fits the per-buffer budget.
    TB = _largest_divisor_leq(B, max(1, _BATCH_TILE_BYTES // max(1, TK * D * in_bytes)))
    n_k = K // TK
    n_b = B // TB

    # Fused mean + (1 - momentum) scale.
    scale = (1.0 - MOMENTUM) / float(B)

    # Explicit VMEM limit with headroom (stays well under v7x's 64 MiB).
    vmem_need = (2 * TB * TK * D * in_bytes      # double-buffered batch slices
                 + 2 * TK * D * st_bytes         # state blocks
                 + 2 * TK * D * st_bytes         # output blocks
                 + TK * D * 4)                   # f32 accumulator scratch
    vmem_limit = int(min(max(2 * vmem_need, 8 << 20), 48 << 20))

    flops = (B + 3) * K * D
    bytes_accessed = B * K * D * in_bytes + 2 * K * D * st_bytes

    return pl.pallas_call(
        functools.partial(_ema_mu_kernel, scale=scale),
        out_shape=jax.ShapeDtypeStruct((1, K, D), mu_state.dtype),
        grid=(n_k, n_b),
        in_specs=[
            pl.BlockSpec((TB, TK, D), lambda k, b: (b, k, 0)),   # mu_batch
            pl.BlockSpec((1, TK, D), lambda k, b: (0, k, 0)),    # mu_state
        ],
        out_specs=pl.BlockSpec((1, TK, D), lambda k, b: (0, k, 0)),
        scratch_shapes=[pltpu.VMEM((1, TK, D), jnp.float32)],
        input_output_aliases={1: 0},             # in-place state update
        cost_estimate=pl.CostEstimate(flops=flops, transcendentals=0,
                                      bytes_accessed=bytes_accessed),
        compiler_params=pltpu.CompilerParams(
            dimension_semantics=("parallel", "arbitrary"),
            vmem_limit_bytes=vmem_limit),
    )(mu_batch, mu_state)


# jit boundary: donate the state buffer so the pallas-level alias is realized
# without an extra HBM copy.
_ema_mu_update_jit = jax.jit(ema_mu_update, donate_argnums=(1,))


# ------------------------------ Module glue ------------------------------- #
class Base:
    """JAX port of the abstract segmentation base model."""

    def __init__(self, n_bases=32, base_dim=128, dtype=jnp.float32):
        self.lbl_margin = 0
        # Persistent EMAU mu state (stands in for self.encoder.emau.mu of a
        # concrete subclass).  Kept in f32 so repeated EMA updates don't
        # accumulate bf16 rounding.
        self.emau_mu = (
            jax.random.normal(jax.random.PRNGKey(1), (1, n_bases, base_dim))
            .astype(dtype)
        )

    def forward(self, *inputs_):
        # Same semantics as the PyTorch module: abstract method.
        # TODO(synk): concrete encoder/decoder forward lives in subclasses
        # only; nothing to lower here.
        raise NotImplementedError

    def inference(self, *inputs_):
        outputs = self.forward(*inputs_)['pred']
        if isinstance(outputs, tuple):
            return outputs[0]
        return outputs

    def crop_label(self, label):
        """label[:, m:-m, m:-m] from Base.step() (no-op when lbl_margin == 0)."""
        m = self.lbl_margin
        if m > 0:
            return label[:, m:-m, m:-m]
        return label

    def ema_step_mu(self, mu_batch):
        """The `use_emau` branch of Base.step(): momentum update of emau.mu
        from the per-batch mu returned by forward().  In-place (donated)."""
        self.emau_mu = _ema_mu_update_jit(mu_batch, self.emau_mu)
        return self.emau_mu

    # TODO(synk): step()'s data-loader iteration, optimizer calls, loss
    # bookkeeping and image visualization are host-side training-loop logic
    # with no kernel equivalent.


# --------------------------------- main ------------------------------------ #
if __name__ == "__main__":
    key = jax.random.PRNGKey(0)
    k_mu, k_lbl = jax.random.split(key)

    B, K, D = 2, 32, 128           # small shapes: batch=2, 32 EM bases, dim=128
    mu_batch = jax.random.normal(k_mu, (B, K, D), dtype=jnp.float32)

    model = Base(n_bases=K, base_dim=D)

    # Reference (plain JAX) computed BEFORE the update: the state buffer is
    # donated (in-place update) inside ema_step_mu.
    ref = MOMENTUM * model.emau_mu + (1.0 - MOMENTUM) * jnp.mean(
        mu_batch, axis=0, keepdims=True)
    ref = jax.block_until_ready(ref)

    new_mu = model.ema_step_mu(mu_batch)
    new_mu = jax.block_until_ready(new_mu)

    assert new_mu.shape == (1, K, D)
    assert jnp.allclose(new_mu, ref, atol=1e-5, rtol=1e-5)

    # Exercise the lbl_margin crop path (no-op at margin 0, same as PyTorch).
    label = jax.random.randint(k_lbl, (B, 16, 16), 0, 2)
    assert model.crop_label(label).shape == (B, 16, 16)

    print("KERNEL_OK")
</pallas_src>

<mosaic_0001>
module attributes {stable_mosaic.version = 11 : i64} {
  func.func @_ema_mu_kernel(%arg0: i32, %arg1: i32, %arg2: memref<2x32x128xf32, #tpu.memory_space<vmem>>, %arg3: memref<1x32x128xf32, #tpu.memory_space<vmem>>, %arg4: memref<1x32x128xf32, #tpu.memory_space<vmem>>, %arg5: memref<1x32x128xf32, #tpu.memory_space<vmem>>) attributes {dimension_semantics = [#tpu.dimension_semantics<parallel>, #tpu.dimension_semantics<arbitrary>], iteration_bounds = array<i64: 1, 1>, scalar_prefetch = 0 : i64, scratch_operands = 1 : i64, tpu.core_type = #tpu.core_type<tc>, window_params = [{transform_indices = @transform_0, window_bounds = array<i64: 2, 32, 128>}, {transform_indices = @transform_1, window_bounds = array<i64: 1, 32, 128>}, {transform_indices = @transform_2, window_bounds = array<i64: 1, 32, 128>}]} {
    %c0_i32 = arith.constant 0 : i32
    %0 = arith.cmpi eq, %arg1, %c0_i32 : i32
    %1 = arith.extui %0 : i1 to i32
    %c0_i32_0 = arith.constant 0 : i32
    %2 = arith.cmpi ne, %1, %c0_i32_0 : i32
    scf.if %2 {
      %cst_11 = arith.constant 0.000000e+00 : f32
      %12 = vector.broadcast %cst_11 : f32 to vector<1x32x128xf32>
      %c0_12 = arith.constant 0 : index
      %c0_13 = arith.constant 0 : index
      %c0_14 = arith.constant 0 : index
      %13 = vector.load %arg5[%c0_12, %c0_13, %c0_14] : memref<1x32x128xf32, #tpu.memory_space<vmem>>, vector<1x32x128xf32>
      tpu.vector_store %arg5[%c0_12, %c0_13, %c0_14], %12 {strides = array<i32>} : memref<1x32x128xf32, #tpu.memory_space<vmem>>, vector<1x32x128xf32>,
    } else {
    }
    %c0 = arith.constant 0 : index
    %c0_1 = arith.constant 0 : index
    %c0_2 = arith.constant 0 : index
    %3 = vector.load %arg2[%c0, %c0_1, %c0_2] : memref<2x32x128xf32, #tpu.memory_space<vmem>>, vector<2x32x128xf32>
    %c0_3 = arith.constant 0 : index
    %c0_4 = arith.constant 0 : index
    %c0_5 = arith.constant 0 : index
    %4 = vector.load %arg5[%c0_3, %c0_4, %c0_5] : memref<1x32x128xf32, #tpu.memory_space<vmem>>, vector<1x32x128xf32>
    %cst = arith.constant dense<0.000000e+00> : vector<32x128xf32>
    %5 = vector.multi_reduction <add>, %3, %cst [0] : vector<2x32x128xf32> to vector<32x128xf32>
    %6 = vector.shape_cast %5 : vector<32x128xf32> to vector<1x32x128xf32>
    %7 = arith.addf %4, %6 : vector<1x32x128xf32>
    %c0_6 = arith.constant 0 : index
    %c0_7 = arith.constant 0 : index
    %c0_8 = arith.constant 0 : index
    %8 = vector.load %arg5[%c0_6, %c0_7, %c0_8] : memref<1x32x128xf32, #tpu.memory_space<vmem>>, vector<1x32x128xf32>
    tpu.vector_store %arg5[%c0_6, %c0_7, %c0_8], %7 {strides = array<i32>} : memref<1x32x128xf32, #tpu.memory_space<vmem>>, vector<1x32x128xf32>,
    %c0_i32_9 = arith.constant 0 : i32
    %9 = arith.cmpi eq, %arg1, %c0_i32_9 : i32
    %10 = arith.extui %9 : i1 to i32
    %c0_i32_10 = arith.constant 0 : i32
    %11 = arith.cmpi ne, %10, %c0_i32_10 : i32
    scf.if %11 {
      %c0_11 = arith.constant 0 : index
      %c0_12 = arith.constant 0 : index
      %c0_13 = arith.constant 0 : index
      %12 = vector.load %arg3[%c0_11, %c0_12, %c0_13] : memref<1x32x128xf32, #tpu.memory_space<vmem>>, vector<1x32x128xf32>
      %cst_14 = arith.constant 0.899999976 : f32
      %13 = vector.broadcast %cst_14 : f32 to vector<1x32x128xf32>
      %14 = arith.mulf %13, %12 : vector<1x32x128xf32>
      %c0_15 = arith.constant 0 : index
      %c0_16 = arith.constant 0 : index
      %c0_17 = arith.constant 0 : index
      %15 = vector.load %arg5[%c0_15, %c0_16, %c0_17] : memref<1x32x128xf32, #tpu.memory_space<vmem>>, vector<1x32x128xf32>
      %cst_18 = arith.constant 5.000000e-02 : f32
      %16 = vector.broadcast %cst_18 : f32 to vector<1x32x128xf32>
      %17 = arith.mulf %16, %15 : vector<1x32x128xf32>
      %18 = arith.addf %14, %17 : vector<1x32x128xf32>
      %c0_19 = arith.constant 0 : index
      %c0_20 = arith.constant 0 : index
      %c0_21 = arith.constant 0 : index
      %19 = vector.load %arg4[%c0_19, %c0_20, %c0_21] : memref<1x32x128xf32, #tpu.memory_space<vmem>>, vector<1x32x128xf32>
      tpu.vector_store %arg4[%c0_19, %c0_20, %c0_21], %18 {strides = array<i32>} : memref<1x32x128xf32, #tpu.memory_space<vmem>>, vector<1x32x128xf32>,
    } else {
    }
    return
  }
  func.func @transform_0(%arg0: i32, %arg1: i32) -> (i32, i32, i32) {
    %c0_i32 = arith.constant 0 : i32
    %c0_i32_0 = arith.constant 0 : i32
    return %arg1, %arg0, %c0_i32 : i32, i32, i32
  }
  func.func @transform_1(%arg0: i32, %arg1: i32) -> (i32, i32, i32) {
    %c0_i32 = arith.constant 0 : i32
    %c0_i32_0 = arith.constant 0 : i32
    %c0_i32_1 = arith.constant 0 : i32
    return %c0_i32, %arg0, %c0_i32_0 : i32, i32, i32
  }
  func.func @transform_2(%arg0: i32, %arg1: i32) -> (i32, i32, i32) {
    %c0_i32 = arith.constant 0 : i32
    %c0_i32_0 = arith.constant 0 : i32
    %c0_i32_1 = arith.constant 0 : i32
    return %c0_i32, %arg0, %c0_i32_0 : i32, i32, i32
  }
}

</mosaic_0001>

<llo_original>
// kernel: ema_mu_update.1
$region0: #{ema_mu_update.1}
  #allocation0 [shape = 'u32[]', space=smem, size = 0x4, offset = 0x4, fixed_abs, tag = 'smem constant byte address 0x4 - core index']
  #allocation1 [shape = 'u32[72,128]{1,0:T(1,128)}', space=vmem, size = 0x9000, scoped, tag = 'internal scratch']
  #allocation2 [shape = 'f32[1,32,128]{2,1,0:T(8,128)}', space=vmem, size = 0x4000, scoped, tag = 'scratch operand']
  %s0 = inlined_call_operand.hbm [shape: f32[2,32,128], index: 0, kind: input, shape index: {}]
  %s1 = inlined_call_operand.hbm [shape: f32[1,32,128], index: 1, kind: input, shape index: {}, may-alias: {1,2}]
  %s2 = inlined_call_operand.hbm [shape: f32[1,32,128], index: 2, kind: output, shape index: {}, may-alias: {1,2}]
  %s3 = sld [smem:[#allocation0]]
  $region34: #{ema_mu_update.1} parent=0
    _
  %s5 = ssub.s32 1, %s3
  %s6 = scalar_select 0, %s5, %s3
  $region1: #{ema_mu_update.1} parent=0
    #allocation3 [shape = 'u8[32768]{0}', space=vmem, size = 0x8000, scoped, tag = 'input window, operand 0, single buffered']
    #allocation4 [shape = 's32[1]{0}', space=sflag, size = 0x4, scoped, tag = 'scoped memory for ema_mu_update.1']
    #allocation5 [shape = 's32[1]{0}', space=sflag, size = 0x4, scoped, tag = 'scoped memory for ema_mu_update.1']
    #allocation6 [shape = 'u8[16384]{0}', space=vmem, size = 0x4000, scoped, tag = 'input window, operand 1, single buffered']
    #allocation7 [shape = 's32[1]{0}', space=sflag, size = 0x4, scoped, tag = 'scoped memory for ema_mu_update.1']
    #allocation8 [shape = 'u8[16384]{0}', space=vmem, size = 0x4000, scoped, tag = 'output window, operand 0, single buffered']
    %7 = vsyncpa [#allocation4], 0
    %8 = vsyncpa [#allocation7], 0
    %9 = vsyncpa [#allocation5], 0
    // Predicated region
    $region2: #{ema_mu_update.1} parent=1 // pred_check
      _
    $region3: #{ema_mu_update.1} parent=1 // pred_check_branch
      %11 = sbr.rel (0) target = $region5
    $region4: #{ema_mu_update.1} parent=1 // pred_region
      %13 = vsyncadd [#allocation4], 0
      %s14 = sshll.u32 %s0, 4
      %s15 = int_to_ptr.hbm [resolvable:$true] %s14
      %s16 = sshll.u32 [#allocation3], 4
      %s17 = int_to_ptr.vmem [resolvable:$true] %s16
      %22 = dma.hbm_to_vmem [thread:$0]  %s15, 1024, %s17, [#allocation4], 128, 128, 8
    $region5: #{ema_mu_update.1} parent=1 // pred_fallthru
      _
    // Predicated region
    $region6: #{ema_mu_update.1} parent=1 // pred_check
      _
    $region7: #{ema_mu_update.1} parent=1 // pred_check_branch
      %24 = sbr.rel (0) target = $region9
    $region8: #{ema_mu_update.1} parent=1 // pred_region
      %26 = vsyncadd [#allocation7], 0
      %s27 = sshll.u32 %s1, 4
      %s28 = int_to_ptr.hbm [resolvable:$true] %s27
      %s29 = sshll.u32 [#allocation6], 4
      %s30 = int_to_ptr.vmem [resolvable:$true] %s29
      %35 = dma.hbm_to_vmem [thread:$0]  %s28, 512, %s30, [#allocation7], 128, 128, 8
    $region9: #{ema_mu_update.1} parent=1 // pred_fallthru
      _
    // Predicated region
    $region10: #{ema_mu_update.1} parent=1 // pred_check
      _
    $region11: #{ema_mu_update.1} parent=1 // pred_check_branch
      %37 = sbr.rel (0) target = $region13
    $region12: #{ema_mu_update.1} parent=1 // pred_region
      %39 = dma.done [#allocation4], 1024
    $region13: #{ema_mu_update.1} parent=1 // pred_fallthru
      _
    // Predicated region
    $region14: #{ema_mu_update.1} parent=1 // pred_check
      _
    $region15: #{ema_mu_update.1} parent=1 // pred_check_branch
      %41 = sbr.rel (0) target = $region17
    $region16: #{ema_mu_update.1} parent=1 // pred_region
      %43 = dma.done [#allocation7], 512
    $region17: #{ema_mu_update.1} parent=1 // pred_fallthru
      _
    %p44 = scmp.eq.s32.totalorder 0, 0
    // Predicated region
    $region18: #{ema_mu_update.1} parent=1 // pred_check
      %p45 = pneg %p44
    $region19: #{ema_mu_update.1} parent=1 // pred_check_branch
      %47 = sbr.rel (%p45) target = $region21
    $region20: #{ema_mu_update.1} parent=1 // pred_region
      %48 = vst [vmem:[#allocation2] sm:$0xff] 0.0
      %49 = vst [vmem:[#allocation2 + $0x8] sm:$0xff] 0.0
      %50 = vst [vmem:[#allocation2 + $0x10] sm:$0xff] 0.0
      %51 = vst [vmem:[#allocation2 + $0x18] sm:$0xff] 0.0
    $region21: #{ema_mu_update.1} parent=1 // pred_fallthru
      _
    %v52 = vld [vmem:[#allocation3] sm:$0xff]
    %v53 = vld [vmem:[#allocation3 + $0x8] sm:$0xff]
    %v54 = vld [vmem:[#allocation3 + $0x10] sm:$0xff]
    %v55 = vld [vmem:[#allocation3 + $0x18] sm:$0xff]
    %v56 = vld [vmem:[#allocation3 + $0x20] sm:$0xff]
    %v57 = vld [vmem:[#allocation3 + $0x28] sm:$0xff]
    %v58 = vld [vmem:[#allocation3 + $0x30] sm:$0xff]
    %v59 = vld [vmem:[#allocation3 + $0x38] sm:$0xff]
    %v60 = vld [vmem:[#allocation2] sm:$0xff]
    %v61 = vld [vmem:[#allocation2 + $0x8] sm:$0xff]
    %v62 = vld [vmem:[#allocation2 + $0x10] sm:$0xff]
    %v63 = vld [vmem:[#allocation2 + $0x18] sm:$0xff]
    %v64 = vadd.f32 %v52, %v56
    %v65 = vadd.f32 %v53, %v57
    %v66 = vadd.f32 %v54, %v58
    %v67 = vadd.f32 %v55, %v59
    %v68 = vadd.f32 %v60, %v64
    %v69 = vadd.f32 %v61, %v65
    %v70 = vadd.f32 %v62, %v66
    %v71 = vadd.f32 %v63, %v67
    %72 = vst [vmem:[#allocation2] sm:$0xff] %v68
    %73 = vst [vmem:[#allocation2 + $0x8] sm:$0xff] %v69
    %74 = vst [vmem:[#allocation2 + $0x10] sm:$0xff] %v70
    %75 = vst [vmem:[#allocation2 + $0x18] sm:$0xff] %v71
    // Predicated region
    $region22: #{ema_mu_update.1} parent=1 // pred_check
      %p76 = pneg %p44
    $region23: #{ema_mu_update.1} parent=1 // pred_check_branch
      %78 = sbr.rel (%p76) target = $region25
    $region24: #{ema_mu_update.1} parent=1 // pred_region
      %v79 = vld [vmem:[#allocation6] sm:$0xff]
      %v80 = vld [vmem:[#allocation6 + $0x8] sm:$0xff]
      %v81 = vld [vmem:[#allocation6 + $0x10] sm:$0xff]
      %v82 = vld [vmem:[#allocation6 + $0x18] sm:$0xff]
      %v83 = vmul.f32 %v79, 0.9
      %v84 = vmul.f32 %v80, 0.9
      %v85 = vmul.f32 %v81, 0.9
      %v86 = vmul.f32 %v82, 0.9
      %v87 = vld [vmem:[#allocation2] sm:$0xff]
      %v88 = vld [vmem:[#allocation2 + $0x8] sm:$0xff]
      %v89 = vld [vmem:[#allocation2 + $0x10] sm:$0xff]
      %v90 = vld [vmem:[#allocation2 + $0x18] sm:$0xff]
      %v91 = vmul.f32 %v87, 0.05
      %v92 = vmul.f32 %v88, 0.05
      %v93 = vmul.f32 %v89, 0.05
      %v94 = vmul.f32 %v90, 0.05
      %v95 = vadd.f32 %v83, %v91
      %v96 = vadd.f32 %v84, %v92
      %v97 = vadd.f32 %v85, %v93
      %v98 = vadd.f32 %v86, %v94
      %99 = vst [vmem:[#allocation8] sm:$0xff] %v95
      %100 = vst [vmem:[#allocation8 + $0x8] sm:$0xff] %v96
      %101 = vst [vmem:[#allocation8 + $0x10] sm:$0xff] %v97
      %102 = vst [vmem:[#allocation8 + $0x18] sm:$0xff] %v98
    $region25: #{ema_mu_update.1} parent=1 // pred_fallthru
      _
    // Predicated region
    $region26: #{ema_mu_update.1} parent=1 // pred_check
      _
    $region27: #{ema_mu_update.1} parent=1 // pred_check_branch
      %104 = sbr.rel (0) target = $region29
    $region28: #{ema_mu_update.1} parent=1 // pred_region
      %106 = vsyncadd [#allocation5], 0
      %s107 = sshll.u32 [#allocation8], 4
      %s108 = int_to_ptr.vmem [resolvable:$true] %s107
      %s109 = sshll.u32 %s2, 4
      %s110 = int_to_ptr.hbm [resolvable:$true] %s109
      %115 = dma.vmem_to_hbm [thread:$0]  %s108, 512, %s110, [#allocation5], 128, 128, 8
    $region29: #{ema_mu_update.1} parent=1 // pred_fallthru
      _
    // Predicated region
    $region30: #{ema_mu_update.1} parent=1 // pred_check
      _
    $region31: #{ema_mu_update.1} parent=1 // pred_check_branch
      %117 = sbr.rel (0) target = $region33
    $region32: #{ema_mu_update.1} parent=1 // pred_region
      %119 = dma.done [#allocation5], 512
    $region33: #{ema_mu_update.1} parent=1 // pred_fallthru
      _
    %120 = vsyncpa [#allocation4], 1
    %121 = vsyncpa [#allocation7], 1
    %122 = vsyncpa [#allocation5], 1

</llo_original>
